<compile_context>
chip_gen: v6e
topology: v6e:2x2x1
jax: 0.10.0
libtpu: 0.0.40
codegen_flags: <defaults>
</compile_context>

<pallas_src>
import functools

import jax
import jax.numpy as jnp
from jax.experimental import pallas as pl
from jax.experimental.pallas import tpu as pltpu

EPS = 1e-5


# ---------------------------------------------------------------------------
# Layout / budget helpers (trace-time Python only).
# ---------------------------------------------------------------------------

def _lane_candidates(hw: int):
    """Divisors of HW that are multiples of 128 (lane-dense last dim)."""
    return [d for d in range(128, hw + 1, 128) if hw % d == 0]


def _choose_fused_layout(cg: int, hw: int):
    """Pick (lane, sublane) reshape of a (Cg, HW) group slab for the fused path."""
    cands = _lane_candidates(hw)
    if not cands:
        # TODO(synk): pad HW up to a multiple of 128 and mask the tail; for now
        # fall back to (Cg, HW) — correct, but uses masked partial stores.
        return hw, cg
    mult8 = [d for d in cands if (cg * hw // d) % 8 == 0]
    if mult8:                       # lane-dense AND sublane-dense
        lane = max(mult8)
        return lane, cg * hw // lane
    lane = min(cands)               # maximize S -> smallest sublane-pad ratio
    return lane, cg * hw // lane


def _choose_tiled_layout(cg: int, hw: int, target_tile_bytes: int):
    """(lane, S, tile_S) for the spatial-tiled path, or None if not expressible."""
    cands = [d for d in _lane_candidates(hw) if (cg * hw // d) % 8 == 0]
    if not cands:
        return None
    big = [d for d in cands if d >= 512]
    lane = min(big) if big else max(cands)
    s = cg * hw // lane
    ts_target = max(8, (target_tile_bytes // (lane * 4)) // 8 * 8)  # f32 working set
    ts = 8
    for d in range(8, s + 1, 8):
        if s % d == 0 and d <= ts_target:
            ts = d
    return lane, s, ts


def _vmem_cap_bytes() -> int:
    """Physical VMEM of this TPU generation, with headroom (v7x: 64 MiB/TC)."""
    cap = None
    try:
        cap = int(pltpu.get_tpu_info().vmem_capacity_bytes)
    except Exception:
        cap = None
    if cap is None:
        try:
            kind = jax.devices()[0].device_kind.lower()
        except Exception:
            kind = ""
        cap = (64 << 20) if "v7" in kind else (128 << 20)
    return max(16 << 20, (cap * 3) // 4)        # 48 MiB on v7x, 96 MiB on v5e/v6e


def _apply_in_bf16(x_dtype) -> bool:
    """Use bf16 elementwise apply only where the VPU has bf16 ALUs (v6e/v7x)."""
    if jnp.dtype(x_dtype) != jnp.dtype(jnp.bfloat16):
        return False
    try:
        kind = jax.devices()[0].device_kind.lower()
    except Exception:
        return False
    return ("v6" in kind) or ("v7" in kind)


def _x_spec(block_shape, index_map, block_bytes: int, n_steps: int):
    """Input BlockSpec; deeper pipelining for small blocks on long grids."""
    if block_bytes <= (512 << 10) and n_steps >= 16:
        return pl.BlockSpec(block_shape, index_map, pipeline_mode=pl.Buffered(3))
    return pl.BlockSpec(block_shape, index_map)


# ---------------------------------------------------------------------------
# Kernels.
# ---------------------------------------------------------------------------

def _fused_gn_relu_kernel(x_ref, gamma_ref, beta_ref, o_ref, *, apply_bf16):
    # x block: (1, 1, S, L); gamma/beta block: (1, S, 1) per-row.
    x = x_ref[0, 0]
    xf = x.astype(jnp.float32)
    s, l = xf.shape
    inv_n = jnp.float32(1.0 / (s * l))

    # Pass 1: group mean (lane reduce, then sublane reduce).
    row = jnp.sum(xf, axis=-1, keepdims=True)                  # (S, 1)
    mean = jnp.sum(row, axis=0, keepdims=True) * inv_n         # (1, 1)

    # Pass 2: centered variance (numerically stable); xf is dead after this.
    xc = xf - mean
    rowq = jnp.sum(xc * xc, axis=-1, keepdims=True)
    var = jnp.sum(rowq, axis=0, keepdims=True) * inv_n
    rstd = jax.lax.rsqrt(var + EPS)

    gamma = gamma_ref[0].astype(jnp.float32)                   # (S, 1)
    beta = beta_ref[0].astype(jnp.float32)
    scale = rstd * gamma                                       # (S, 1)

    if apply_bf16:
        # bf16 VALU apply on the original block (v6e/v7x): halves VPU work and
        # temp VMEM; the statistics above stay in f32.
        y = jnp.maximum(
            (x - mean.astype(x.dtype)) * scale.astype(x.dtype)
            + beta.astype(x.dtype),
            jnp.zeros((), x.dtype))
    else:
        # Apply off the centered tensor: no mean-fold, one less live f32 temp.
        y = jnp.maximum(xc * scale + beta, 0.0)
    o_ref[0, 0] = y.astype(o_ref.dtype)


def _tiled_reduce_kernel(x_ref, mean_ref, rstd_ref, mean_sc, m2_sc):
    # x block: (1, 1, TS, L); outputs: per-(n, g) mean / rstd with block (1,1,1,1).
    t = pl.program_id(2)
    nt = pl.num_programs(2)

    xf = x_ref[0, 0].astype(jnp.float32)                       # (TS, L)
    tile_n = jnp.float32(xf.shape[0] * xf.shape[1])

    row = jnp.sum(xf, axis=-1, keepdims=True)
    tsum = jnp.sum(row, axis=0, keepdims=True)                 # (1, 1)
    tmean = tsum * (1.0 / tile_n)
    xc = xf - tmean
    rowq = jnp.sum(xc * xc, axis=-1, keepdims=True)
    tm2 = jnp.sum(rowq, axis=0, keepdims=True)                 # tile-centered M2

    @pl.when(t == 0)
    def _():
        mean_sc[...] = tmean
        m2_sc[...] = tm2

    @pl.when(t != 0)
    def _():
        # Chan/Welford combine: numerically stable accumulation across tiles.
        n_prev = tile_n * t.astype(jnp.float32)
        n_new = n_prev + tile_n
        delta = tmean - mean_sc[...]
        mean_sc[...] = mean_sc[...] + delta * (tile_n / n_new)
        m2_sc[...] = m2_sc[...] + tm2 + (delta * delta) * (n_prev * tile_n / n_new)

    @pl.when(t == nt - 1)
    def _():
        n_tot = tile_n * nt
        var = m2_sc[...] / n_tot
        mean_ref[0, 0] = mean_sc[...]
        rstd_ref[0, 0] = jax.lax.rsqrt(var + EPS)


def _tiled_apply_kernel(x_ref, gamma_ref, beta_ref, mean_ref, rstd_ref, o_ref, *,
                        apply_bf16):
    x = x_ref[0, 0]                                            # (TS, L)
    gamma = gamma_ref[0].astype(jnp.float32)                   # (TS, 1)
    beta = beta_ref[0].astype(jnp.float32)
    mean = mean_ref[0, 0]                                      # (1, 1) f32
    rstd = rstd_ref[0, 0]                                      # (1, 1) f32
    scale = rstd * gamma                                       # (TS, 1)
    if apply_bf16:
        y = jnp.maximum(
            (x - mean.astype(x.dtype)) * scale.astype(x.dtype)
            + beta.astype(x.dtype),
            jnp.zeros((), x.dtype))
    else:
        y = jnp.maximum((x.astype(jnp.float32) - mean) * scale + beta, 0.0)
    o_ref[0, 0] = y.astype(o_ref.dtype)


# ---------------------------------------------------------------------------
# Wrapper.
# ---------------------------------------------------------------------------

def norm_activation(x_nchw: jax.Array, gamma: jax.Array, beta: jax.Array,
                    num_groups: int, *,
                    max_fused_block_bytes: int = 4 << 20,
                    target_tile_bytes: int = 1 << 20) -> jax.Array:
    """GroupNorm(num_groups, eps=1e-5, affine) + ReLU over NCHW, in Pallas."""
    N, C, H, W = x_nchw.shape
    G = num_groups
    assert C % G == 0, "channels must be divisible by num_groups"
    Cg = C // G
    HW = H * W

    in_itemsize = jnp.dtype(x_nchw.dtype).itemsize
    cap = _vmem_cap_bytes()
    apply_bf16 = _apply_in_bf16(x_nchw.dtype)

    lane, S = _choose_fused_layout(Cg, HW)
    pad_s = -(-S // 8) * 8
    blk_in = pad_s * lane * in_itemsize            # one (S, L) block, input dtype
    blk_f32 = pad_s * lane * 4
    n_f32_temps = 2 if apply_bf16 else 3
    # in + out double-buffered, plus f32 temps, plus params/headroom.
    fused_need = 4 * blk_in + n_f32_temps * blk_f32 + (2 << 20)

    tiled = _choose_tiled_layout(Cg, HW, target_tile_bytes)
    use_tiled = tiled is not None and (
        blk_in > max_fused_block_bytes
        or fused_need > cap
        or (N * G < 2 and blk_in >= (1 << 20))     # keep both v7x TCs busy
    )

    def rows_params(lane_, s_):
        # Expand per-channel gamma/beta to per-row (each channel spans HW//lane rows).
        rows_per_c = HW // lane_
        g_rows = jnp.broadcast_to(gamma.reshape(G, Cg, 1),
                                  (G, Cg, rows_per_c)).reshape(G, s_, 1)
        b_rows = jnp.broadcast_to(beta.reshape(G, Cg, 1),
                                  (G, Cg, rows_per_c)).reshape(G, s_, 1)
        return g_rows, b_rows

    if not use_tiled:
        # ---------------- fused single-block path (one read + one write) ----
        x = x_nchw.reshape(N, G, S, lane)          # pure reshape, no transpose
        g_rows, b_rows = rows_params(lane, S)
        vmem_limit = int(min(cap, max(fused_need, 16 << 20)))
        cost = pl.CostEstimate(
            flops=7 * N * C * HW, transcendentals=N * G,
            bytes_accessed=2 * N * C * HW * in_itemsize)

        out = pl.pallas_call(
            functools.partial(_fused_gn_relu_kernel, apply_bf16=apply_bf16),
            out_shape=jax.ShapeDtypeStruct((N, G, S, lane), x_nchw.dtype),
            grid_spec=pltpu.PrefetchScalarGridSpec(
                num_scalar_prefetch=0,
                grid=(N, G),
                in_specs=[
                    _x_spec((1, 1, S, lane), lambda n, g: (n, g, 0, 0),
                            blk_in, N * G),
                    pl.BlockSpec((1, S, 1), lambda n, g: (g, 0, 0)),
                    pl.BlockSpec((1, S, 1), lambda n, g: (g, 0, 0)),
                ],
                out_specs=pl.BlockSpec((1, 1, S, lane), lambda n, g: (n, g, 0, 0)),
            ),
            compiler_params=pltpu.CompilerParams(
                dimension_semantics=("parallel", "parallel"),
                vmem_limit_bytes=vmem_limit),
            cost_estimate=cost,
        )(x, g_rows, b_rows)
        return out.reshape(N, C, H, W)

    # ---------------- spatial-tiled path: Welford reduce + parallel apply ---
    lane, S, TS = tiled
    T = S // TS
    x = x_nchw.reshape(N, G, S, lane)
    g_rows, b_rows = rows_params(lane, S)

    tile_in = TS * lane * in_itemsize
    tile_f32 = TS * lane * 4
    red_limit = int(min(cap, max(2 * tile_in + 3 * tile_f32 + (2 << 20), 16 << 20)))
    app_limit = int(min(cap, max(4 * tile_in + 3 * tile_f32 + (2 << 20), 16 << 20)))

    mean, rstd = pl.pallas_call(
        _tiled_reduce_kernel,
        out_shape=(jax.ShapeDtypeStruct((N, G, 1, 1), jnp.float32),
                   jax.ShapeDtypeStruct((N, G, 1, 1), jnp.float32)),
        grid_spec=pltpu.PrefetchScalarGridSpec(
            num_scalar_prefetch=0,
            grid=(N, G, T),
            in_specs=[
                _x_spec((1, 1, TS, lane), lambda n, g, t: (n, g, t, 0),
                        tile_in, N * G * T),
            ],
            out_specs=(pl.BlockSpec((1, 1, 1, 1), lambda n, g, t: (n, g, 0, 0)),
                       pl.BlockSpec((1, 1, 1, 1), lambda n, g, t: (n, g, 0, 0))),
            scratch_shapes=[pltpu.VMEM((1, 1), jnp.float32),
                            pltpu.VMEM((1, 1), jnp.float32)],
        ),
        compiler_params=pltpu.CompilerParams(
            dimension_semantics=("parallel", "parallel", "arbitrary"),
            vmem_limit_bytes=red_limit),
        cost_estimate=pl.CostEstimate(
            flops=5 * N * C * HW, transcendentals=N * G,
            bytes_accessed=N * C * HW * in_itemsize),
    )(x)

    out = pl.pallas_call(
        functools.partial(_tiled_apply_kernel, apply_bf16=apply_bf16),
        out_shape=jax.ShapeDtypeStruct((N, G, S, lane), x_nchw.dtype),
        grid_spec=pltpu.PrefetchScalarGridSpec(
            num_scalar_prefetch=0,
            grid=(N, G, T),
            in_specs=[
                _x_spec((1, 1, TS, lane), lambda n, g, t: (n, g, t, 0),
                        tile_in, N * G * T),
                pl.BlockSpec((1, TS, 1), lambda n, g, t: (g, t, 0)),
                pl.BlockSpec((1, TS, 1), lambda n, g, t: (g, t, 0)),
                pl.BlockSpec((1, 1, 1, 1), lambda n, g, t: (n, g, 0, 0)),
                pl.BlockSpec((1, 1, 1, 1), lambda n, g, t: (n, g, 0, 0)),
            ],
            out_specs=pl.BlockSpec((1, 1, TS, lane), lambda n, g, t: (n, g, t, 0)),
        ),
        compiler_params=pltpu.CompilerParams(
            dimension_semantics=("parallel", "parallel", "parallel"),
            vmem_limit_bytes=app_limit),
        cost_estimate=pl.CostEstimate(
            flops=3 * N * C * HW, transcendentals=0,
            bytes_accessed=2 * N * C * HW * in_itemsize),
    )(x, g_rows, b_rows, mean, rstd)
    return out.reshape(N, C, H, W)


# ---------------------------------------------------------------------------
# Reference + tests.
# ---------------------------------------------------------------------------

def _reference(x_nchw, gamma, beta, num_groups):
    N, C, H, W = x_nchw.shape
    G = num_groups
    xg = x_nchw.reshape(N, G, C // G, H, W).astype(jnp.float32)
    mean = xg.mean(axis=(2, 3, 4), keepdims=True)
    var = xg.var(axis=(2, 3, 4), keepdims=True)
    y = (xg - mean) * jax.lax.rsqrt(var + EPS)
    y = y.reshape(N, C, H, W)
    y = y * gamma.reshape(1, C, 1, 1) + beta.reshape(1, C, 1, 1)
    return jnp.maximum(y, 0.0).astype(x_nchw.dtype)


if __name__ == "__main__":
    key = jax.random.PRNGKey(0)
    k1, k2, k3, k4, k5 = jax.random.split(key, 5)

    # --- Test A: required shape, fused single-block path (f32) -------------
    N, C, H, W, G = 2, 4, 16, 16, 2
    x = jax.random.normal(k1, (N, C, H, W), dtype=jnp.float32) * 2.0 + 0.5
    gamma = 1.0 + 0.3 * jax.random.normal(k2, (C,), dtype=jnp.float32)
    beta = 0.2 * jax.random.normal(k3, (C,), dtype=jnp.float32)
    out = jax.block_until_ready(norm_activation(x, gamma, beta, G))
    ref = _reference(x, gamma, beta, G)
    assert out.shape == (N, C, H, W)
    assert jnp.allclose(out, ref, atol=1e-4, rtol=1e-5), "fused f32 mismatch"

    # --- Test B: bf16 input (bf16 apply on v6e/v7x, f32 apply elsewhere) ---
    xb = jax.random.normal(k4, (2, 8, 16, 16), dtype=jnp.float32).astype(jnp.bfloat16)
    gb = 1.0 + 0.3 * jax.random.normal(k5, (8,), dtype=jnp.float32)
    bb = 0.2 * jax.random.normal(k2, (8,), dtype=jnp.float32)
    outb = jax.block_until_ready(norm_activation(xb, gb, bb, 2))
    refb = _reference(xb, gb, bb, 2)
    assert jnp.allclose(outb.astype(jnp.float32), refb.astype(jnp.float32),
                        atol=1e-1, rtol=5e-2), "bf16 mismatch"

    # --- Test C: force the spatial-tiled reduce + apply path ---------------
    xc = jax.random.normal(k3, (1, 16, 32, 32), dtype=jnp.float32) + 1.0
    gc = 1.0 + 0.3 * jax.random.normal(k1, (16,), dtype=jnp.float32)
    bc = 0.2 * jax.random.normal(k4, (16,), dtype=jnp.float32)
    outc = jax.block_until_ready(
        norm_activation(xc, gc, bc, 2,
                        max_fused_block_bytes=0, target_tile_bytes=16 << 10))
    refc = _reference(xc, gc, bc, 2)
    assert jnp.allclose(outc, refc, atol=1e-4, rtol=1e-5), "tiled path mismatch"

    print("KERNEL_OK")
</pallas_src>

<mosaic_0001>
module attributes {stable_mosaic.version = 11 : i64} {
  func.func @_fused_gn_relu_kernel(%arg0: i32, %arg1: i32, %arg2: memref<1x1x4x128xf32, #tpu.memory_space<vmem>>, %arg3: memref<1x4x1xf32, #tpu.memory_space<vmem>>, %arg4: memref<1x4x1xf32, #tpu.memory_space<vmem>>, %arg5: memref<1x1x4x128xf32, #tpu.memory_space<vmem>>) attributes {dimension_semantics = [#tpu.dimension_semantics<parallel>, #tpu.dimension_semantics<parallel>], iteration_bounds = array<i64: 2, 2>, scalar_prefetch = 0 : i64, scratch_operands = 0 : i64, tpu.core_type = #tpu.core_type<tc>, window_params = [{transform_indices = @transform_0, window_bounds = array<i64: 1, 1, 4, 128>}, {transform_indices = @transform_1, window_bounds = array<i64: 1, 4, 1>}, {transform_indices = @transform_2, window_bounds = array<i64: 1, 4, 1>}, {transform_indices = @transform_3, window_bounds = array<i64: 1, 1, 4, 128>}]} {
    %c0 = arith.constant 0 : index
    %c0_0 = arith.constant 0 : index
    %c0_1 = arith.constant 0 : index
    %c0_2 = arith.constant 0 : index
    %0 = vector.load %arg2[%c0, %c0_0, %c0_1, %c0_2] : memref<1x1x4x128xf32, #tpu.memory_space<vmem>>, vector<1x1x4x128xf32>
    %1 = vector.shape_cast %0 : vector<1x1x4x128xf32> to vector<4x128xf32>
    %cst = arith.constant dense<0.000000e+00> : vector<4xf32>
    %2 = vector.multi_reduction <add>, %1, %cst [1] : vector<4x128xf32> to vector<4xf32>
    %3 = vector.shape_cast %2 : vector<4xf32> to vector<4x1xf32>
    %cst_3 = arith.constant dense<0.000000e+00> : vector<1xf32>
    %4 = vector.multi_reduction <add>, %3, %cst_3 [0] : vector<4x1xf32> to vector<1xf32>
    %5 = vector.shape_cast %4 : vector<1xf32> to vector<1x1xf32>
    %cst_4 = arith.constant 0.001953125 : f32
    %6 = vector.broadcast %cst_4 : f32 to vector<1x1xf32>
    %7 = arith.mulf %5, %6 : vector<1x1xf32>
    %8 = vector.broadcast %7 : vector<1x1xf32> to vector<4x128xf32>
    %9 = arith.subf %1, %8 : vector<4x128xf32>
    %10 = arith.mulf %9, %9 : vector<4x128xf32>
    %cst_5 = arith.constant dense<0.000000e+00> : vector<4xf32>
    %11 = vector.multi_reduction <add>, %10, %cst_5 [1] : vector<4x128xf32> to vector<4xf32>
    %12 = vector.shape_cast %11 : vector<4xf32> to vector<4x1xf32>
    %cst_6 = arith.constant dense<0.000000e+00> : vector<1xf32>
    %13 = vector.multi_reduction <add>, %12, %cst_6 [0] : vector<4x1xf32> to vector<1xf32>
    %14 = vector.shape_cast %13 : vector<1xf32> to vector<1x1xf32>
    %cst_7 = arith.constant 0.001953125 : f32
    %15 = vector.broadcast %cst_7 : f32 to vector<1x1xf32>
    %16 = arith.mulf %14, %15 : vector<1x1xf32>
    %cst_8 = arith.constant 9.99999974E-6 : f32
    %17 = vector.broadcast %cst_8 : f32 to vector<1x1xf32>
    %18 = arith.addf %16, %17 : vector<1x1xf32>
    %19 = math.rsqrt %18 : vector<1x1xf32>
    %c0_9 = arith.constant 0 : index
    %c0_10 = arith.constant 0 : index
    %c0_11 = arith.constant 0 : index
    %20 = vector.load %arg3[%c0_9, %c0_10, %c0_11] : memref<1x4x1xf32, #tpu.memory_space<vmem>>, vector<1x4x1xf32>
    %21 = vector.shape_cast %20 : vector<1x4x1xf32> to vector<4x1xf32>
    %c0_12 = arith.constant 0 : index
    %c0_13 = arith.constant 0 : index
    %c0_14 = arith.constant 0 : index
    %22 = vector.load %arg4[%c0_12, %c0_13, %c0_14] : memref<1x4x1xf32, #tpu.memory_space<vmem>>, vector<1x4x1xf32>
    %23 = vector.shape_cast %22 : vector<1x4x1xf32> to vector<4x1xf32>
    %24 = vector.broadcast %19 : vector<1x1xf32> to vector<4x1xf32>
    %25 = arith.mulf %24, %21 : vector<4x1xf32>
    %26 = vector.broadcast %25 : vector<4x1xf32> to vector<4x128xf32>
    %27 = arith.mulf %9, %26 : vector<4x128xf32>
    %28 = vector.broadcast %23 : vector<4x1xf32> to vector<4x128xf32>
    %29 = arith.addf %27, %28 : vector<4x128xf32>
    %cst_15 = arith.constant 0.000000e+00 : f32
    %30 = vector.broadcast %cst_15 : f32 to vector<4x128xf32>
    %31 = arith.maximumf %29, %30 : vector<4x128xf32>
    %c0_16 = arith.constant 0 : index
    %c0_17 = arith.constant 0 : index
    %c0_18 = arith.constant 0 : index
    %c0_19 = arith.constant 0 : index
    %32 = vector.load %arg5[%c0_16, %c0_17, %c0_18, %c0_19] : memref<1x1x4x128xf32, #tpu.memory_space<vmem>>, vector<1x1x4x128xf32>
    %33 = vector.shape_cast %32 : vector<1x1x4x128xf32> to vector<4x128xf32>
    %34 = vector.shape_cast %31 : vector<4x128xf32> to vector<1x1x4x128xf32>
    tpu.vector_store %arg5[%c0_16, %c0_17, %c0_18, %c0_19], %34 {strides = array<i32>} : memref<1x1x4x128xf32, #tpu.memory_space<vmem>>, vector<1x1x4x128xf32>,
    return
  }
  func.func @transform_0(%arg0: i32, %arg1: i32) -> (i32, i32, i32, i32) {
    %c0_i32 = arith.constant 0 : i32
    %c0_i32_0 = arith.constant 0 : i32
    %c0_i32_1 = arith.constant 0 : i32
    return %arg0, %arg1, %c0_i32, %c0_i32_0 : i32, i32, i32, i32
  }
  func.func @transform_1(%arg0: i32, %arg1: i32) -> (i32, i32, i32) {
    %c0_i32 = arith.constant 0 : i32
    %c0_i32_0 = arith.constant 0 : i32
    %c0_i32_1 = arith.constant 0 : i32
    return %arg1, %c0_i32, %c0_i32_0 : i32, i32, i32
  }
  func.func @transform_2(%arg0: i32, %arg1: i32) -> (i32, i32, i32) {
    %c0_i32 = arith.constant 0 : i32
    %c0_i32_0 = arith.constant 0 : i32
    %c0_i32_1 = arith.constant 0 : i32
    return %arg1, %c0_i32, %c0_i32_0 : i32, i32, i32
  }
  func.func @transform_3(%arg0: i32, %arg1: i32) -> (i32, i32, i32, i32) {
    %c0_i32 = arith.constant 0 : i32
    %c0_i32_0 = arith.constant 0 : i32
    %c0_i32_1 = arith.constant 0 : i32
    return %arg0, %arg1, %c0_i32, %c0_i32_0 : i32, i32, i32, i32
  }
}

</mosaic_0001>

<llo_original>
// kernel: tpu_custom_call.1
$region0: #{tpu_custom_call.1}
  #allocation0 [shape = 'u32[]', space=smem, size = 0x4, offset = 0x4, fixed_abs, tag = 'smem constant byte address 0x4 - core index']
  #allocation1 [shape = 'u32[144,128]{1,0:T(1,128)}', space=vmem, size = 0x12000, scoped, tag = 'internal scratch']
  %s0 = inlined_call_operand.vmem [shape: f32[2,2,4,128], index: 0, kind: input, shape index: {}]
  %s1 = inlined_call_operand.vmem [shape: f32[2,4,1], index: 1, kind: input, shape index: {}]
  %s2 = inlined_call_operand.vmem [shape: f32[2,4,1], index: 2, kind: input, shape index: {}]
  %s3 = inlined_call_operand.hbm [shape: f32[2,2,4,128], index: 3, kind: output, shape index: {}]
  %s4 = sld [smem:[#allocation0]]
  $region45: #{tpu_custom_call.1} parent=0
    _
  %s6 = ssub.s32 1, %s4
  %s7 = scalar_select 0, %s6, %s4
  $region1: #{tpu_custom_call.1} parent=0
    #allocation2 [shape = 'u8[4096]{0}', space=vmem, size = 0x1000, scoped, tag = 'output window, operand 0']
    #allocation3 [shape = 's32[2]{0}', space=sflag, size = 0x8, scoped, tag = 'scoped memory for tpu_custom_call.1']
    %8 = vsyncpa [#allocation3], 0
    %s9 = scalar_lea.sflag [#allocation3], 1
    %10 = vsyncpa %s9, 0
    loop: start=0, step=1, limit=6
    $region2: #{tpu_custom_call.1} parent=1 // loop_pre_header
      _
    $region3: #{tpu_custom_call.1} parent=1 // loop_header
      %s12 = sphi 0, %s16
      %p13 = scmp.ge.s32.totalorder %s12, 6
      %s19 = sphi 0, %s31
      %s20 = sphi 0, %s27
      %s21 = sphi 0, %s19
      %s22 = sphi 0, %s20
      %s23 = sphi 0, %s21
      %s24 = sphi 0, %s22
      %s36 = sphi 0, %s38
      %s39 = sphi 0, %s36
      %s40 = sphi 0, %s39
      %s56 = sphi 0, %s40
      %s62 = sphi 0, %s64
      %s65 = sphi 0, %s62
      %s66 = sphi 0, %s65
      %s82 = sphi 0, %s66
      %s88 = sphi 0, %s90
      %s91 = sphi 0, %s88
      %s92 = sphi 0, %s91
      %s108 = sphi 0, %s92
      %s116 = sphi 0, %s118
      %s119 = sphi 0, %s116
      %s120 = sphi 0, %s119
      %s136 = sphi 0, %s120
    $region4: #{tpu_custom_call.1} parent=1 // loop_header_branch
      %15 = sbr.rel (%p13) target = $region8
    $region5: #{tpu_custom_call.1} parent=1 // loop_body
      %s17 = ssub.s32 %s12, 1
      %s18 = ssub.s32 %s12, 2
      %s25 = sadd.s32 1, %s20
      %p26 = scmp.ge.s32.totalorder %s25, 2
      %s27 = scalar_select %p26, 0, %s25
      %s28 = sadd.s32 1, %s19
      %s29 = scalar_select %p26, %s28, %s19
      %p30 = scmp.ge.s32.totalorder %s29, 2
      %s31 = scalar_select %p30, 0, %s29
      %s32 = ssub.s32 %s19, %s31
      %s33 = ssub.s32 %s20, %s27
      %s34 = sor.u32 %s32, %s33
      %p35 = scmp.eq.s32.totalorder %s34, 0
      %s37 = sadd.s32 %s36, 1
      %s38 = scalar_select %p35, %s36, %s37
      %p41 = pneg %p35
      %p42 = scmp.eq.s32.totalorder %s12, 3
      %p43 = por %p41, %p42
      %p44 = scmp.ne.s32.totalorder %s36, %s39
      %p45 = scmp.eq.s32.totalorder %s12, 0
      %p46 = por %p44, %p45
      %p47 = scmp.ne.s32.totalorder %s36, %s39
      %p48 = scmp.eq.s32.totalorder %s17, 3
      %p49 = por %p47, %p48
      %p50 = scmp.ne.s32.totalorder %s39, %s40
      %p51 = scmp.eq.s32.totalorder %s17, 0
      %p52 = por %p50, %p51
      %p53 = scmp.ne.s32.totalorder %s39, %s40
      %p54 = scmp.eq.s32.totalorder %s18, 3
      %p55 = por %p53, %p54
      %p57 = scmp.ne.s32.totalorder %s40, %s56
      %p58 = scmp.eq.s32.totalorder %s18, 0
      %p59 = por %p57, %p58
      %s60 = ssub.s32 %s20, %s27
      %p61 = scmp.eq.s32.totalorder %s60, 0
      %s63 = sadd.s32 %s62, 1
      %s64 = scalar_select %p61, %s62, %s63
      %p67 = pneg %p61
      %p68 = scmp.eq.s32.totalorder %s12, 3
      %p69 = por %p67, %p68
      %p70 = scmp.ne.s32.totalorder %s62, %s65
      %p71 = scmp.eq.s32.totalorder %s12, 0
      %p72 = por %p70, %p71
      %p73 = scmp.ne.s32.totalorder %s62, %s65
      %p74 = scmp.eq.s32.totalorder %s17, 3
      %p75 = por %p73, %p74
      %p76 = scmp.ne.s32.totalorder %s65, %s66
      %p77 = scmp.eq.s32.totalorder %s17, 0
      %p78 = por %p76, %p77
      %p79 = scmp.ne.s32.totalorder %s65, %s66
      %p80 = scmp.eq.s32.totalorder %s18, 3
      %p81 = por %p79, %p80
      %p83 = scmp.ne.s32.totalorder %s66, %s82
      %p84 = scmp.eq.s32.totalorder %s18, 0
      %p85 = por %p83, %p84
      %s86 = ssub.s32 %s20, %s27
      %p87 = scmp.eq.s32.totalorder %s86, 0
      %s89 = sadd.s32 %s88, 1
      %s90 = scalar_select %p87, %s88, %s89
      %p93 = pneg %p87
      %p94 = scmp.eq.s32.totalorder %s12, 3
      %p95 = por %p93, %p94
      %p96 = scmp.ne.s32.totalorder %s88, %s91
      %p97 = scmp.eq.s32.totalorder %s12, 0
      %p98 = por %p96, %p97
      %p99 = scmp.ne.s32.totalorder %s88, %s91
      %p100 = scmp.eq.s32.totalorder %s17, 3
      %p101 = por %p99, %p100
      %p102 = scmp.ne.s32.totalorder %s91, %s92
      %p103 = scmp.eq.s32.totalorder %s17, 0
      %p104 = por %p102, %p103
      %p105 = scmp.ne.s32.totalorder %s91, %s92
      %p106 = scmp.eq.s32.totalorder %s18, 3
      %p107 = por %p105, %p106
      %p109 = scmp.ne.s32.totalorder %s92, %s108
      %p110 = scmp.eq.s32.totalorder %s18, 0
      %p111 = por %p109, %p110
      %s112 = ssub.s32 %s19, %s31
      %s113 = ssub.s32 %s20, %s27
      %s114 = sor.u32 %s112, %s113
      %p115 = scmp.eq.s32.totalorder %s114, 0
      %s117 = sadd.s32 %s116, 1
      %s118 = scalar_select %p115, %s116, %s117
      %p121 = pneg %p115
      %p122 = scmp.eq.s32.totalorder %s12, 3
      %p123 = por %p121, %p122
      %p124 = scmp.ne.s32.totalorder %s116, %s119
      %p125 = scmp.eq.s32.totalorder %s12, 0
      %p126 = por %p124, %p125
      %p127 = scmp.ne.s32.totalorder %s116, %s119
      %p128 = scmp.eq.s32.totalorder %s17, 3
      %p129 = por %p127, %p128
      %p130 = scmp.ne.s32.totalorder %s119, %s120
      %p131 = scmp.eq.s32.totalorder %s17, 0
      %p132 = por %p130, %p131
      %p133 = scmp.ne.s32.totalorder %s119, %s120
      %p134 = scmp.eq.s32.totalorder %s18, 3
      %p135 = por %p133, %p134
      %p137 = scmp.ne.s32.totalorder %s120, %s136
      %p138 = scmp.eq.s32.totalorder %s18, 0
      %p139 = por %p137, %p138
      %p140 = scmp.le.s32.totalorder 1, %s12
      %p141 = scmp.lt.s32.totalorder %s12, 5
      %p142 = pnand %p140, %p141
      %p143 = pneg %p142
      // Predicated region
      $region9: #{tpu_custom_call.1} parent=5 // pred_check
        _
      $region10: #{tpu_custom_call.1} parent=5 // pred_check_branch
        %145 = sbr.rel (%p142) target = $region12
      $region11: #{tpu_custom_call.1} parent=5 // pred_region
        %s146 = ssub.s32 %s12, 1
      $region12: #{tpu_custom_call.1} parent=5 // pred_fallthru
        _
      %p147 = scmp.lt.s32.totalorder %s12, 4
      // Predicated region
      $region13: #{tpu_custom_call.1} parent=5 // pred_check
        %p148 = pneg %p147
      $region14: #{tpu_custom_call.1} parent=5 // pred_check_branch
        %150 = sbr.rel (%p148) target = $region16
      $region15: #{tpu_custom_call.1} parent=5 // pred_region
        // Predicated region
        $region17: #{tpu_custom_call.1} parent=15 // pred_check
          %p151 = pneg %p46
        $region18: #{tpu_custom_call.1} parent=15 // pred_check_branch
          %153 = sbr.rel (%p151) target = $region20
        $region19: #{tpu_custom_call.1} parent=15 // pred_region
          %p154 = scmp.lt.s32.totalorder %s19, 1
          %s155 = scalar_select %p154, %s19, 1
          %p156 = scmp.lt.s32.totalorder %s20, 1
          %s157 = scalar_select %p156, %s20, 1
          %s158 = smul.addr %s155, 2
          %s159 = sadd.s32 %s157, %s158
          %s160 = smul.addr %s159, 4
          %s161 = scalar_lea.vmem %s0, %s160
        $region20: #{tpu_custom_call.1} parent=15 // pred_fallthru
          _
        // Predicated region
        $region21: #{tpu_custom_call.1} parent=15 // pred_check
          %p162 = pneg %p72
        $region22: #{tpu_custom_call.1} parent=15 // pred_check_branch
          %164 = sbr.rel (%p162) target = $region24
        $region23: #{tpu_custom_call.1} parent=15 // pred_region
          %p165 = scmp.lt.s32.totalorder %s20, 1
          %s166 = scalar_select %p165, %s20, 1
          %s167 = smul.addr %s166, 4
          %s168 = scalar_lea.vmem %s1, %s167
        $region24: #{tpu_custom_call.1} parent=15 // pred_fallthru
          _
        // Predicated region
        $region25: #{tpu_custom_call.1} parent=15 // pred_check
          %p169 = pneg %p98
        $region26: #{tpu_custom_call.1} parent=15 // pred_check_branch
          %171 = sbr.rel (%p169) target = $region28
        $region27: #{tpu_custom_call.1} parent=15 // pred_region
          %p172 = scmp.lt.s32.totalorder %s20, 1
          %s173 = scalar_select %p172, %s20, 1
          %s174 = smul.addr %s173, 4
          %s175 = scalar_lea.vmem %s2, %s174
        $region28: #{tpu_custom_call.1} parent=15 // pred_fallthru
          _
      $region16: #{tpu_custom_call.1} parent=5 // pred_fallthru
        _
      %p176 = scmp.le.s32.totalorder 1, %s12
      %p177 = scmp.lt.s32.totalorder %s12, 5
      %p178 = pnand %p176, %p177
      %p179 = pneg %p178
      // Predicated region
      $region29: #{tpu_custom_call.1} parent=5 // pred_check
        _
      $region30: #{tpu_custom_call.1} parent=5 // pred_check_branch
        %181 = sbr.rel (%p178) target = $region32
      $region31: #{tpu_custom_call.1} parent=5 // pred_region
        %s182 = ssub.s32 %s12, 1
        %p183 = scmp.lt.s32.totalorder %s21, 1
        %s184 = scalar_select %p183, %s21, 1
        %p185 = scmp.lt.s32.totalorder %s22, 1
        %s186 = scalar_select %p185, %s22, 1
        %s187 = smul.addr %s184, 2
        %s188 = sadd.s32 %s186, %s187
        %s189 = smul.addr %s188, 4
        %s190 = scalar_lea.vmem %s0, %s189
        %p191 = pneg %p52
        %p192 = pneg %p49
        %p193 = scmp.lt.s32.totalorder %s22, 1
        %s194 = scalar_select %p193, %s22, 1
        %s195 = smul.addr %s194, 4
        %s196 = scalar_lea.vmem %s1, %s195
        %p197 = pneg %p78
        %p198 = pneg %p75
        %p199 = scmp.lt.s32.totalorder %s22, 1
        %s200 = scalar_select %p199, %s22, 1
        %s201 = smul.addr %s200, 4
        %s202 = scalar_lea.vmem %s2, %s201
        %p203 = pneg %p104
        %p204 = pneg %p101
        %p205 = pneg %p132
        %p206 = pneg %p129
        %s207 = sand.u32 %s119, 1
        %s208 = scalar_lea.sflag [#allocation3], %s207
        %s209 = sand.u32 %s119, 1
        %s210 = smul.addr %s209, 4
        %s211 = scalar_lea.vmem [#allocation2], %s210
        %p212 = scmp.lt.s32.totalorder %s21, 1
        %s213 = scalar_select %p212, %s21, 1
        %p214 = scmp.lt.s32.totalorder %s22, 1
        %s215 = scalar_select %p214, %s22, 1
        %s216 = smul.addr %s213, 2
        %s217 = sadd.s32 %s215, %s216
        %s218 = smul.addr %s217, 4
        %s219 = scalar_lea.vmem %s0, %s218
        %p220 = scmp.lt.s32.totalorder %s22, 1
        %s221 = scalar_select %p220, %s22, 1
        %s222 = smul.addr %s221, 4
        %s223 = scalar_lea.vmem %s1, %s222
        %p224 = scmp.lt.s32.totalorder %s22, 1
        %s225 = scalar_select %p224, %s22, 1
        %s226 = smul.addr %s225, 4
        %s227 = scalar_lea.vmem %s2, %s226
        %v228 = vld [vmem:[%s219] sm:$0xf]
        %vm229 = vcmask 1043456
        %v230 = vsel %vm229, %v228, 0.0
        %231 = vadd.xlane.f32.xlu0 %v230
        %v232 = vpop.xlane.xlu0 %231
        %v233 = vsel %vm229, %v232, 0.0
        %v234 = vrot.slane %v233, 4
        %v235 = vadd.f32 %v233, %v234
        %v236 = vrot.slane %v235, 2
        %v237 = vadd.f32 %v235, %v236
        %v238 = vrot.slane %v237, 1
        %v239 = vadd.f32 %v237, %v238
        %v240 = vmul.f32 %v239, 0.001953125
        %v241 = vsub.f32 %v228, %v240
        %v242 = vmul.f32 %v241, %v241
        %v243 = vsel %vm229, %v242, 0.0
        %244 = vadd.xlane.f32.xlu0 %v243
        %v245 = vpop.xlane.xlu0 %244
        %v246 = vsel %vm229, %v245, 0.0
        %v247 = vrot.slane %v246, 4
        %v248 = vadd.f32 %v246, %v247
        %v249 = vrot.slane %v248, 2
        %v250 = vadd.f32 %v248, %v249
        %v251 = vrot.slane %v250, 1
        %v252 = vadd.f32 %v250, %v251
        %v253 = vmul.f32 %v252, 0.001953125
        %v254 = vadd.f32 %v253, 1e-05
        %v255 = vrsqrt.pop %v254
        %v256 = vld [vmem:[%s223] sm:$0xf]
        %v257 = vld [vmem:[%s227] sm:$0xf]
        %v258 = vmul.f32 %v255, %v256
        %260 = vset.pattern.permute.xlu0 0
        %261 = vperm.xlu0 %260, %v258
        %v262 = vpop.permute.xlu0 %261
        %v264 = vmul.f32 %v241, %v262
        %266 = vset.pattern.permute.xlu0 0
        %267 = vperm.xlu0 %266, %v257
        %v268 = vpop.permute.xlu0 %267
        %v270 = vadd.f32 %v264, %v268
        %v271 = vmax.f32 %v270, 0.0
        %272 = vst [vmem:[%s211] sm:$0xf] %v271
        %s273 = sand.u32 %s119, 1
        %s274 = scalar_lea.sflag [#allocation3], %s273
        %s275 = sand.u32 %s119, 1
        %s276 = smul.addr %s275, 4
        %s277 = scalar_lea.vmem [#allocation2], %s276
        // Predicated region
        $region33: #{tpu_custom_call.1} parent=31 // pred_check
          %p278 = pneg %p129
        $region34: #{tpu_custom_call.1} parent=31 // pred_check_branch
          %280 = sbr.rel (%p278) target = $region36
        $region35: #{tpu_custom_call.1} parent=31 // pred_region
          %s282 = ssub.s32 64, 64
          %283 = vsyncadd %s274, %s282
          %s284 = smul.addr %s21, 2
          %s285 = sadd.s32 %s22, %s284
          %s286 = smul.addr %s285, 64
          %s287 = scalar_lea.hbm %s3, %s286
          %s289 = sshll.u32 %s277, 4
          %s290 = int_to_ptr.vmem [resolvable:$true] %s289
          %292 = dma.vmem_to_hbm [thread:$0]  %s290, 64, %s287, %s274
        $region36: #{tpu_custom_call.1} parent=31 // pred_fallthru
          _
      $region32: #{tpu_custom_call.1} parent=5 // pred_fallthru
        _
      %p293 = scmp.le.s32.totalorder 2, %s12
      // Predicated region
      $region37: #{tpu_custom_call.1} parent=5 // pred_check
        %p294 = pneg %p293
      $region38: #{tpu_custom_call.1} parent=5 // pred_check_branch
        %296 = sbr.rel (%p294) target = $region40
      $region39: #{tpu_custom_call.1} parent=5 // pred_region
        %s297 = ssub.s32 %s12, 2
        // Predicated region
        $region41: #{tpu_custom_call.1} parent=39 // pred_check
          %p298 = pneg %p135
        $region42: #{tpu_custom_call.1} parent=39 // pred_check_branch
          %300 = sbr.rel (%p298) target = $region44
        $region43: #{tpu_custom_call.1} parent=39 // pred_region
          %s301 = sand.u32 %s120, 1
          %s302 = scalar_lea.sflag [#allocation3], %s301
          %s303 = sand.u32 %s120, 1
          %s304 = smul.addr %s303, 4
          %s305 = scalar_lea.vmem [#allocation2], %s304
          %306 = dma.done %s302, 64
        $region44: #{tpu_custom_call.1} parent=39 // pred_fallthru
          _
      $region40: #{tpu_custom_call.1} parent=5 // pred_fallthru
        _
    $region6: #{tpu_custom_call.1} parent=1 // loop_footer
      %s16 = sadd.s32 1, %s12
    $region7: #{tpu_custom_call.1} parent=1 // loop_footer_branch
      %11 = sbr.rel target = $region3
    $region8: #{tpu_custom_call.1} parent=1 // loop_exit
      _
    %307 = vsyncpa [#allocation3], 1
    %s308 = scalar_lea.sflag [#allocation3], 1
    %309 = vsyncpa %s308, 1

</llo_original>
